<compile_context>
chip_gen: v5e
topology: v5e:2x2
jax: 0.10.0
libtpu: 0.0.40
codegen_flags: <defaults>
</compile_context>

<pallas_src>
import jax
import jax.numpy as jnp
from jax import lax
from jax.experimental import pallas as pl
from jax.experimental.pallas import tpu as pltpu


def _round_up(x, m):
    return ((x + m - 1) // m) * m


def _cdiv(a, b):
    return (a + b - 1) // b


# Contract dim 1 of both operands: (h0, K) x (TB, K) -> (h0, TB).
# Same dimension numbers as the Q @ K^T step in the official flash-attention kernel.
_TRANS_B_DIMS = (((1,), (1,)), ((), ()))


def _make_kernel(chunk, n_chunks):
    def kernel(x_ref, w1_ref, b1_ref, w2_ref, b2_ref, w3_ref, b3_ref, out_ref):
        """Fused 3-layer MLP critic, batch-on-lanes layout.

        x_ref  : (TB, num_obs) f32   obs tile, batch-major exactly as stored in HBM
        w1_ref : (h0, num_obs) bf16  PyTorch weight layout (out, in)
        b1_ref : (h0, 1)       f32
        w2_ref : (h1, h0)      bf16
        b2_ref : (h1, 1)       f32
        w3_ref : (h1, 1)       f32   head weight column (VPU/XLU path, not MXU)
        b3_ref : (1, 1)        f32   scalar bias in SMEM
        out_ref: (1, TB)       f32   lane-dense value row
        """
        w1 = w1_ref[...]
        b1 = b1_ref[...]
        w2 = w2_ref[...]
        b2 = b2_ref[...]
        w3 = w3_ref[...]
        b3 = b3_ref[0, 0]

        def body(c, carry):
            start = pl.multiple_of(c * chunk, chunk)
            # (chunk, num_obs) slice of the streamed obs tile; cast to bf16 for the MXU.
            xc = x_ref[pl.ds(start, chunk), :].astype(jnp.bfloat16)
            # Batch -> lanes transpose fused into the matmul (contract dim 1 of both).
            z1 = lax.dot_general(w1, xc, _TRANS_B_DIMS,
                                 preferred_element_type=jnp.float32)
            h1 = jnp.tanh(z1 + b1)                                  # (h0, chunk) f32
            z2 = jnp.dot(w2, h1.astype(jnp.bfloat16),
                         preferred_element_type=jnp.float32)
            h2 = jnp.tanh(z2 + b2)                                  # (h1, chunk) f32
            # 32 -> 1 head: VPU multiply + XLU sublane reduce (an N=1 MXU matmul
            # would waste the MXU and lengthen the dependency chain).
            v = jnp.sum(h2 * w3, axis=0, keepdims=True) + b3        # (1, chunk)
            out_ref[:, pl.ds(start, chunk)] = v
            return carry

        lax.fori_loop(0, n_chunks, body, 0, unroll=(n_chunks <= 16))

    return kernel


def mlp_critic_forward(obs, params, *, max_tile=8192):
    """obs: (B, num_obs) float32 (PyTorch layout). params from init_params.
    Returns value estimates of shape (B,) — matches v_net(obs).squeeze(-1)."""
    w1 = params["w1"].astype(jnp.bfloat16)     # (h0, num_obs)  MXU operand
    b1 = params["b1"]                          # (h0, 1) f32
    w2 = params["w2"].astype(jnp.bfloat16)     # (h1, h0)       MXU operand
    b2 = params["b2"]                          # (h1, 1) f32
    w3_col = params["w3"].T                    # (h1, 1) f32    VPU head weight
    b3 = params["b3"]                          # (1, 1)  f32    SMEM scalar

    B, num_obs = obs.shape
    h0 = w1.shape[0]
    h1 = w2.shape[0]

    # --- tile sizing --------------------------------------------------------
    # Batch lives on the 128-lane axis of every intermediate, so TB is a
    # multiple of 128.  Large TB amortizes the ~0.35us/grid-step overhead;
    # aim for >= 2 (even) steps when possible so v7x's 2 TCs both get work.
    lanes = _round_up(B, 128)
    if lanes <= 128:
        tb = 128
    else:
        n_steps = max(2, _cdiv(lanes, max_tile))
        if n_steps % 2:
            n_steps += 1                       # balanced split across v7x's 2 TCs
        tb = _round_up(_cdiv(lanes, n_steps), 128)

    grid = (_cdiv(B, tb),)                     # ragged tail handled by Pallas
    b_out = grid[0] * tb                       # lane-padded -> all out stores full

    # Inner lane-chunk: largest multiple of 128 (preferring 512) that divides TB,
    # keeping the per-iteration working set near vreg-resident while the
    # streamed DMA tile stays big.
    chunk = 128
    for c in (512, 1024, 896, 768, 640, 384, 256, 128):
        if tb % c == 0:
            chunk = c
            break
    n_chunks = tb // chunk

    const2 = lambda j: (0, 0)

    out = pl.pallas_call(
        _make_kernel(chunk, n_chunks),
        out_shape=jax.ShapeDtypeStruct((1, b_out), jnp.float32),
        grid=grid,
        in_specs=[
            pl.BlockSpec((tb, num_obs), lambda j: (j, 0)),        # streamed obs tile
            pl.BlockSpec((h0, num_obs), const2),                  # weights stay VMEM-resident
            pl.BlockSpec((h0, 1), const2),                        # (constant index maps)
            pl.BlockSpec((h1, h0), const2),
            pl.BlockSpec((h1, 1), const2),
            pl.BlockSpec((h1, 1), const2),
            pl.BlockSpec(memory_space=pltpu.MemorySpace.SMEM),    # b3 scalar
        ],
        out_specs=pl.BlockSpec((1, tb), lambda j: (0, j)),        # lane-dense output row
        compiler_params=pltpu.CompilerParams(
            dimension_semantics=("parallel",),
            vmem_limit_bytes=32 * 1024 * 1024,                    # explicit budget (v7x-safe)
        ),
    )(obs, w1, b1, w2, b2, w3_col, b3)

    return out[0, :B]   # squeeze(-1); drops lane-padding columns


def init_params(key, num_obs, hidden_sizes):
    """Deterministic init matching MLPCritic layer shapes, PyTorch layout:
    weight (out_features, in_features), bias stored as (out_features, 1)."""
    sizes = [num_obs] + list(hidden_sizes) + [1]
    params = {}
    keys = jax.random.split(key, 2 * (len(sizes) - 1))
    for i in range(len(sizes) - 1):
        fan_in, fan_out = sizes[i], sizes[i + 1]
        bound = 1.0 / jnp.sqrt(fan_in)
        w = jax.random.uniform(keys[2 * i], (fan_out, fan_in),
                               minval=-bound, maxval=bound, dtype=jnp.float32)
        b = jax.random.uniform(keys[2 * i + 1], (fan_out, 1),
                               minval=-bound, maxval=bound, dtype=jnp.float32)
        params[f"w{i + 1}"] = w
        params[f"b{i + 1}"] = b
    return params


def mlp_critic_ref(obs, params):
    """Pure-JAX f32 reference (PyTorch-layout weights)."""
    h = jnp.tanh(obs @ params["w1"].T + params["b1"][:, 0])
    h = jnp.tanh(h @ params["w2"].T + params["b2"][:, 0])
    v = h @ params["w3"].T + params["b3"][:, 0]
    return v[:, 0]


if __name__ == "__main__":
    num_obs = 16
    hidden_sizes = (32, 32)   # activation_fn = Tanh
    batch = 8

    key = jax.random.PRNGKey(0)
    k_obs, k_params, k_obs2 = jax.random.split(key, 3)
    params = init_params(k_params, num_obs, hidden_sizes)

    # Small single-tile case (partial block: B=8 < 128).
    obs = jax.random.normal(k_obs, (batch, num_obs), dtype=jnp.float32)
    values = jax.block_until_ready(mlp_critic_forward(obs, params))
    ref = mlp_critic_ref(obs, params)
    assert values.shape == (batch,)
    # bf16 MXU operands with f32 accumulation -> loosened tolerance.
    assert jnp.allclose(values, ref, atol=2e-2, rtol=2e-2)

    # Multi-step grid with a ragged tail (exercises the 2-step / partial-block path).
    batch2 = 300
    obs2 = jax.random.normal(k_obs2, (batch2, num_obs), dtype=jnp.float32)
    values2 = jax.block_until_ready(mlp_critic_forward(obs2, params))
    ref2 = mlp_critic_ref(obs2, params)
    assert values2.shape == (batch2,)
    assert jnp.allclose(values2, ref2, atol=2e-2, rtol=2e-2)

    print("KERNEL_OK")
</pallas_src>

<mosaic_0001>
module attributes {stable_mosaic.version = 11 : i64} {
  func.func @kernel(%arg0: i32, %arg1: memref<128x16xf32, #tpu.memory_space<vmem>>, %arg2: memref<32x16xbf16, #tpu.memory_space<vmem>>, %arg3: memref<32x1xf32, #tpu.memory_space<vmem>>, %arg4: memref<32x32xbf16, #tpu.memory_space<vmem>>, %arg5: memref<32x1xf32, #tpu.memory_space<vmem>>, %arg6: memref<32x1xf32, #tpu.memory_space<vmem>>, %arg7: memref<1x1xf32, #tpu.memory_space<smem>>, %arg8: memref<1x128xf32, #tpu.memory_space<vmem>>) attributes {dimension_semantics = [#tpu.dimension_semantics<parallel>], iteration_bounds = array<i64: 1>, scalar_prefetch = 0 : i64, scratch_operands = 0 : i64, tpu.core_type = #tpu.core_type<tc>, window_params = [{transform_indices = @transform_0, window_bounds = array<i64: 128, 16>}, {pipeline_mode = #tpu.pipeline_mode<synchronous>, transform_indices = @transform_1, window_bounds = array<i64: 32, 16>}, {pipeline_mode = #tpu.pipeline_mode<synchronous>, transform_indices = @transform_2, window_bounds = array<i64: 32, 1>}, {pipeline_mode = #tpu.pipeline_mode<synchronous>, transform_indices = @transform_3, window_bounds = array<i64: 32, 32>}, {pipeline_mode = #tpu.pipeline_mode<synchronous>, transform_indices = @transform_4, window_bounds = array<i64: 32, 1>}, {pipeline_mode = #tpu.pipeline_mode<synchronous>, transform_indices = @transform_5, window_bounds = array<i64: 32, 1>}, {transform_indices = @transform_6, window_bounds = array<i64: 1, 1>}, {transform_indices = @transform_7, window_bounds = array<i64: 1, 128>}]} {
    %c0 = arith.constant 0 : index
    %c0_0 = arith.constant 0 : index
    %0 = vector.load %arg2[%c0, %c0_0] : memref<32x16xbf16, #tpu.memory_space<vmem>>, vector<32x16xbf16>
    %c0_1 = arith.constant 0 : index
    %c0_2 = arith.constant 0 : index
    %1 = vector.load %arg3[%c0_1, %c0_2] : memref<32x1xf32, #tpu.memory_space<vmem>>, vector<32x1xf32>
    %c0_3 = arith.constant 0 : index
    %c0_4 = arith.constant 0 : index
    %2 = vector.load %arg4[%c0_3, %c0_4] : memref<32x32xbf16, #tpu.memory_space<vmem>>, vector<32x32xbf16>
    %c0_5 = arith.constant 0 : index
    %c0_6 = arith.constant 0 : index
    %3 = vector.load %arg5[%c0_5, %c0_6] : memref<32x1xf32, #tpu.memory_space<vmem>>, vector<32x1xf32>
    %c0_7 = arith.constant 0 : index
    %c0_8 = arith.constant 0 : index
    %4 = vector.load %arg6[%c0_7, %c0_8] : memref<32x1xf32, #tpu.memory_space<vmem>>, vector<32x1xf32>
    %c0_9 = arith.constant 0 : index
    %c0_10 = arith.constant 0 : index
    %5 = memref.load %arg7[%c0_9, %c0_10] : memref<1x1xf32, #tpu.memory_space<smem>>
    %c0_i32 = arith.constant 0 : i32
    %c128_i32 = arith.constant 128 : i32
    %6 = arith.muli %c0_i32, %c128_i32 : i32
    %7 = tpu.assume_multiple %6, 128 : i32
    %8 = arith.index_cast %7 : i32 to index
    %c0_11 = arith.constant 0 : index
    %9 = vector.load %arg1[%8, %c0_11] : memref<128x16xf32, #tpu.memory_space<vmem>>, vector<128x16xf32>
    %10 = arith.truncf %9 : vector<128x16xf32> to vector<128x16xbf16>
    %cst = arith.constant dense<0.000000e+00> : vector<32x128xf32>
    %11 = tpu.matmul %0, %10, %cst {dimension_numbers = #tpu.dot_dimension_numbers<[1], [1], [0], [0], [0, 0, 1, 0], [], []>} : vector<32x16xbf16>, vector<128x16xbf16>, vector<32x128xf32> -> vector<32x128xf32>
    %12 = vector.broadcast %1 : vector<32x1xf32> to vector<32x128xf32>
    %13 = arith.addf %11, %12 : vector<32x128xf32>
    %14 = math.tanh %13 : vector<32x128xf32>
    %15 = arith.truncf %14 : vector<32x128xf32> to vector<32x128xbf16>
    %cst_12 = arith.constant dense<0.000000e+00> : vector<32x128xf32>
    %16 = tpu.matmul %2, %15, %cst_12 {dimension_numbers = #tpu.dot_dimension_numbers<[1], [0], [0], [1], [0, 0, 1, 1], [], []>} : vector<32x32xbf16>, vector<32x128xbf16>, vector<32x128xf32> -> vector<32x128xf32>
    %17 = vector.broadcast %3 : vector<32x1xf32> to vector<32x128xf32>
    %18 = arith.addf %16, %17 : vector<32x128xf32>
    %19 = math.tanh %18 : vector<32x128xf32>
    %20 = vector.broadcast %4 : vector<32x1xf32> to vector<32x128xf32>
    %21 = arith.mulf %19, %20 : vector<32x128xf32>
    %cst_13 = arith.constant dense<0.000000e+00> : vector<128xf32>
    %22 = vector.multi_reduction <add>, %21, %cst_13 [0] : vector<32x128xf32> to vector<128xf32>
    %23 = vector.shape_cast %22 : vector<128xf32> to vector<1x128xf32>
    %24 = vector.broadcast %5 : f32 to vector<1x128xf32>
    %25 = arith.addf %23, %24 : vector<1x128xf32>
    %c0_14 = arith.constant 0 : index
    %26 = arith.index_cast %7 : i32 to index
    %27 = vector.load %arg8[%c0_14, %26] : memref<1x128xf32, #tpu.memory_space<vmem>>, vector<1x128xf32>
    tpu.vector_store %arg8[%c0_14, %26], %25 {strides = array<i32>} : memref<1x128xf32, #tpu.memory_space<vmem>>, vector<1x128xf32>,
    %c1_i32 = arith.constant 1 : i32
    return
  }
  func.func @transform_0(%arg0: i32) -> (i32, i32) {
    %c0_i32 = arith.constant 0 : i32
    %c0_i32_0 = arith.constant 0 : i32
    return %arg0, %c0_i32 : i32, i32
  }
  func.func @transform_1(%arg0: i32) -> (i32, i32) {
    %c0_i32 = arith.constant 0 : i32
    %c0_i32_0 = arith.constant 0 : i32
    %c0_i32_1 = arith.constant 0 : i32
    return %c0_i32, %c0_i32_0 : i32, i32
  }
  func.func @transform_2(%arg0: i32) -> (i32, i32) {
    %c0_i32 = arith.constant 0 : i32
    %c0_i32_0 = arith.constant 0 : i32
    %c0_i32_1 = arith.constant 0 : i32
    return %c0_i32, %c0_i32_0 : i32, i32
  }
  func.func @transform_3(%arg0: i32) -> (i32, i32) {
    %c0_i32 = arith.constant 0 : i32
    %c0_i32_0 = arith.constant 0 : i32
    %c0_i32_1 = arith.constant 0 : i32
    return %c0_i32, %c0_i32_0 : i32, i32
  }
  func.func @transform_4(%arg0: i32) -> (i32, i32) {
    %c0_i32 = arith.constant 0 : i32
    %c0_i32_0 = arith.constant 0 : i32
    %c0_i32_1 = arith.constant 0 : i32
    return %c0_i32, %c0_i32_0 : i32, i32
  }
  func.func @transform_5(%arg0: i32) -> (i32, i32) {
    %c0_i32 = arith.constant 0 : i32
    %c0_i32_0 = arith.constant 0 : i32
    %c0_i32_1 = arith.constant 0 : i32
    return %c0_i32, %c0_i32_0 : i32, i32
  }
  func.func @transform_6(%arg0: i32) -> (i32, i32) {
    %c0_i32 = arith.constant 0 : i32
    %c0_i32_0 = arith.constant 0 : i32
    %c0_i32_1 = arith.constant 0 : i32
    return %c0_i32, %c0_i32_0 : i32, i32
  }
  func.func @transform_7(%arg0: i32) -> (i32, i32) {
    %c0_i32 = arith.constant 0 : i32
    %c0_i32_0 = arith.constant 0 : i32
    return %c0_i32, %arg0 : i32, i32
  }
}

</mosaic_0001>

<llo_original>
// kernel: tpu_custom_call.1
$region0: #{tpu_custom_call.1}
  #allocation0 [shape = 'u32[]', space=smem, size = 0x4, offset = 0x4, fixed_abs, tag = 'smem constant byte address 0x4 - core index']
  #allocation1 [shape = 'u32[72,128]{1,0:T(1,128)}', space=vmem, size = 0x9000, scoped, tag = 'internal scratch']
  #allocation2 [shape = 'f32[1,1]{1,0:T(1,128)S(6)}', space=smem, size = 0x200, scoped, tag = 'scoped memory for tpu_custom_call.1']
  %s0 = inlined_call_operand.vmem [shape: f32[8,16], index: 0, kind: input, shape index: {}]
  %s1 = inlined_call_operand.vmem [shape: bf16[32,16], index: 1, kind: input, shape index: {}]
  %s2 = inlined_call_operand.vmem [shape: f32[32,1], index: 2, kind: input, shape index: {}]
  %s3 = inlined_call_operand.vmem [shape: bf16[32,32], index: 3, kind: input, shape index: {}]
  %s4 = inlined_call_operand.vmem [shape: f32[32,1], index: 4, kind: input, shape index: {}]
  %s5 = inlined_call_operand.vmem [shape: f32[32,1], index: 5, kind: input, shape index: {}]
  %s6 = inlined_call_operand.<no memory space> [shape: f32[1,1], index: 6, kind: input, shape index: {}]
  %s7 = inlined_call_operand.hbm [shape: f32[1,128], index: 7, kind: output, shape index: {}]
  %s8 = sld [smem:[#allocation0]]
  $region38: #{tpu_custom_call.1} parent=0
    _
  %s10 = ssub.s32 1, %s8
  %s11 = scalar_select 0, %s10, %s8
  %12 = sst [smem:[#allocation2]] %s6
  $region1: #{tpu_custom_call.1} parent=0
    #allocation3 [shape = 'u8[512]{0}', space=vmem, size = 0x400, scoped, tag = 'output window, operand 0, single buffered']
    #allocation4 [shape = 's32[1]{0}', space=sflag, size = 0x4, scoped, tag = 'scoped memory for tpu_custom_call.1']
    %13 = vsyncpa [#allocation4], 0
    // Predicated region
    $region2: #{tpu_custom_call.1} parent=1 // pred_check
      _
    $region3: #{tpu_custom_call.1} parent=1 // pred_check_branch
      %15 = sbr.rel (0) target = $region5
    $region4: #{tpu_custom_call.1} parent=1 // pred_region
      _
    $region5: #{tpu_custom_call.1} parent=1 // pred_fallthru
      _
    // Predicated region
    $region6: #{tpu_custom_call.1} parent=1 // pred_check
      _
    $region7: #{tpu_custom_call.1} parent=1 // pred_check_branch
      %17 = sbr.rel (0) target = $region9
    $region8: #{tpu_custom_call.1} parent=1 // pred_region
      _
    $region9: #{tpu_custom_call.1} parent=1 // pred_fallthru
      _
    // Predicated region
    $region10: #{tpu_custom_call.1} parent=1 // pred_check
      _
    $region11: #{tpu_custom_call.1} parent=1 // pred_check_branch
      %19 = sbr.rel (0) target = $region13
    $region12: #{tpu_custom_call.1} parent=1 // pred_region
      _
    $region13: #{tpu_custom_call.1} parent=1 // pred_fallthru
      _
    // Predicated region
    $region14: #{tpu_custom_call.1} parent=1 // pred_check
      _
    $region15: #{tpu_custom_call.1} parent=1 // pred_check_branch
      %21 = sbr.rel (0) target = $region17
    $region16: #{tpu_custom_call.1} parent=1 // pred_region
      _
    $region17: #{tpu_custom_call.1} parent=1 // pred_fallthru
      _
    // Predicated region
    $region18: #{tpu_custom_call.1} parent=1 // pred_check
      _
    $region19: #{tpu_custom_call.1} parent=1 // pred_check_branch
      %23 = sbr.rel (0) target = $region21
    $region20: #{tpu_custom_call.1} parent=1 // pred_region
      _
    $region21: #{tpu_custom_call.1} parent=1 // pred_fallthru
      _
    // Predicated region
    $region22: #{tpu_custom_call.1} parent=1 // pred_check
      _
    $region23: #{tpu_custom_call.1} parent=1 // pred_check_branch
      %25 = sbr.rel (0) target = $region25
    $region24: #{tpu_custom_call.1} parent=1 // pred_region
      _
    $region25: #{tpu_custom_call.1} parent=1 // pred_fallthru
      _
    // Predicated region
    $region26: #{tpu_custom_call.1} parent=1 // pred_check
      _
    $region27: #{tpu_custom_call.1} parent=1 // pred_check_branch
      %27 = sbr.rel (0) target = $region29
    $region28: #{tpu_custom_call.1} parent=1 // pred_region
      _
    $region29: #{tpu_custom_call.1} parent=1 // pred_fallthru
      _
    %v29 = vld [vmem:[%s1] sm:$0xf]
    %v30 = vld [vmem:[%s1 + $0x4] sm:$0xf]
    %v31 = vld [vmem:[%s1 + $0x8] sm:$0xf]
    %v32 = vld [vmem:[%s1 + $0xc] sm:$0xf]
    %v33 = vld [vmem:[%s2] sm:$0xff]
    %v34 = vld [vmem:[%s2 + $0x8] sm:$0xff]
    %v35 = vld [vmem:[%s2 + $0x10] sm:$0xff]
    %v36 = vld [vmem:[%s2 + $0x18] sm:$0xff]
    %v37 = vld [vmem:[%s3] sm:$0xf]
    %v38 = vld [vmem:[%s3 + $0x4] sm:$0xf]
    %v39 = vld [vmem:[%s3 + $0x8] sm:$0xf]
    %v40 = vld [vmem:[%s3 + $0xc] sm:$0xf]
    %v41 = vld [vmem:[%s4] sm:$0xff]
    %v42 = vld [vmem:[%s4 + $0x8] sm:$0xff]
    %v43 = vld [vmem:[%s4 + $0x10] sm:$0xff]
    %v44 = vld [vmem:[%s4 + $0x18] sm:$0xff]
    %v45 = vld [vmem:[%s5] sm:$0xff]
    %v46 = vld [vmem:[%s5 + $0x8] sm:$0xff]
    %v47 = vld [vmem:[%s5 + $0x10] sm:$0xff]
    %v48 = vld [vmem:[%s5 + $0x18] sm:$0xff]
    %s49 = sld [smem:[#allocation2]]
    %v50 = vld [vmem:[%s0] sm:$0xff]
    %v51 = vld [vmem:[%s0 + $0x8] sm:$0xff]
    %v52 = vld [vmem:[%s0 + $0x10] sm:$0xff]
    %v53 = vld [vmem:[%s0 + $0x18] sm:$0xff]
    %v54 = vld [vmem:[%s0 + $0x20] sm:$0xff]
    %v55 = vld [vmem:[%s0 + $0x28] sm:$0xff]
    %v56 = vld [vmem:[%s0 + $0x30] sm:$0xff]
    %v57 = vld [vmem:[%s0 + $0x38] sm:$0xff]
    %v58 = vld [vmem:[%s0 + $0x40] sm:$0xff]
    %v59 = vld [vmem:[%s0 + $0x48] sm:$0xff]
    %v60 = vld [vmem:[%s0 + $0x50] sm:$0xff]
    %v61 = vld [vmem:[%s0 + $0x58] sm:$0xff]
    %v62 = vld [vmem:[%s0 + $0x60] sm:$0xff]
    %v63 = vld [vmem:[%s0 + $0x68] sm:$0xff]
    %v64 = vld [vmem:[%s0 + $0x70] sm:$0xff]
    %v65 = vld [vmem:[%s0 + $0x78] sm:$0xff]
    %v66 = vpack.c.bf16 %v51, %v50
    %v67 = vpack.c.bf16 %v53, %v52
    %v68 = vpack.c.bf16 %v55, %v54
    %v69 = vpack.c.bf16 %v57, %v56
    %v70 = vpack.c.bf16 %v59, %v58
    %v71 = vpack.c.bf16 %v61, %v60
    %v72 = vpack.c.bf16 %v63, %v62
    %v73 = vpack.c.bf16 %v65, %v64
    %75 = vset.pattern.permute.xlu0 0
    %76 = vperm.xlu0 %75, %v33
    %v77 = vpop.permute.xlu0 %76
    %80 = vset.pattern.permute.xlu0 0
    %81 = vperm.xlu0 %80, %v34
    %v82 = vpop.permute.xlu0 %81
    %85 = vset.pattern.permute.xlu0 0
    %86 = vperm.xlu0 %85, %v35
    %v87 = vpop.permute.xlu0 %86
    %90 = vset.pattern.permute.xlu0 0
    %91 = vperm.xlu0 %90, %v36
    %v92 = vpop.permute.xlu0 %91
    %v98 = vunpack.c.l.b16 %v29
    %v99 = vunpack.c.l.b16 %v30
    %v100 = vunpack.c.l.b16 %v31
    %v101 = vunpack.c.l.b16 %v32
    %v102 = vpack.c.b16 %v99, %v98
    %v103 = vpack.c.b16 %v101, %v100
    %vm104 = vcmask 130048
    %v106 = vsel %vm104, %v102, 0
    %v109 = vsel %vm104, %v103, 0
    %v112 = vsel %vm104, %v66, 0
    %v115 = vsel %vm104, %v67, 0
    %v118 = vsel %vm104, %v68, 0
    %v121 = vsel %vm104, %v69, 0
    %v124 = vsel %vm104, %v70, 0
    %v127 = vsel %vm104, %v71, 0
    %v130 = vsel %vm104, %v72, 0
    %v133 = vsel %vm104, %v73, 0
    %135 = vmatpush.bf16.xpose.msra.mxu0 %v133
    %136 = vmatpush.bf16.xpose.msra.mxu0 %v130
    %137 = vmatpush.bf16.xpose.msra.mxu0 %v127
    %138 = vmatpush.bf16.xpose.msra.mxu0 %v124
    %139 = vmatpush.bf16.xpose.msra.mxu0 %v121
    %140 = vmatpush.bf16.xpose.msra.mxu0 %v118
    %141 = vmatpush.bf16.xpose.msra.mxu0 %v115
    %142 = vmatpush.bf16.xpose.msra.mxu0 %v112
    %143 = vmatmul.bf16.gmra.mxu0 %v106
    %v144 = vpop.f32.mrf.mxu0
    %v145 = vadd.f32 %v77, %v144
    %v146 = vpop.f32.mrf.mxu0
    %v147 = vadd.f32 %v82, %v146
    %148 = vmatmul.bf16.gmra.mxu0 %v109
    %v149 = vpop.f32.mrf.mxu0
    %v150 = vadd.f32 %v87, %v149
    %v151 = vpop.f32.mrf.mxu0
    %v152 = vadd.f32 %v92, %v151
    %153 = vdwg.mxu0
    %v154 = vtanh.pop %v145
    %v155 = vtanh.pop %v147
    %v156 = vtanh.pop %v150
    %v157 = vtanh.pop %v152
    %v158 = vpack.c.bf16 %v155, %v154
    %v159 = vpack.c.bf16 %v157, %v156
    %161 = vset.pattern.permute.xlu0 0
    %162 = vperm.xlu0 %161, %v41
    %v163 = vpop.permute.xlu0 %162
    %166 = vset.pattern.permute.xlu0 0
    %167 = vperm.xlu0 %166, %v42
    %v168 = vpop.permute.xlu0 %167
    %171 = vset.pattern.permute.xlu0 0
    %172 = vperm.xlu0 %171, %v43
    %v173 = vpop.permute.xlu0 %172
    %176 = vset.pattern.permute.xlu0 0
    %177 = vperm.xlu0 %176, %v44
    %v178 = vpop.permute.xlu0 %177
    %v184 = vunpack.c.l.b16 %v37
    %v185 = vunpack.c.l.b16 %v38
    %v186 = vunpack.c.l.b16 %v39
    %v187 = vunpack.c.l.b16 %v40
    %v188 = vpack.c.b16 %v185, %v184
    %v189 = vpack.c.b16 %v187, %v186
    %vm190 = vcmask 261120
    %v192 = vsel %vm190, %v188, 0
    %v195 = vsel %vm190, %v189, 0
    %197 = vmatpush.bf16.msra.mxu0 0
    %198 = vmatpush.bf16.msra.mxu0 0
    %199 = vmatpush.bf16.msra.mxu0 0
    %200 = vmatpush.bf16.msra.mxu0 0
    %201 = vmatpush.bf16.msra.mxu0 0
    %202 = vmatpush.bf16.msra.mxu0 0
    %203 = vmatpush.bf16.msra.mxu0 %v159
    %204 = vmatpush.bf16.msra.mxu0 %v158
    %205 = vmatmul.bf16.gmra.mxu0 %v192
    %v206 = vpop.f32.mrf.mxu0
    %v207 = vadd.f32 %v163, %v206
    %v208 = vpop.f32.mrf.mxu0
    %v209 = vadd.f32 %v168, %v208
    %210 = vmatmul.bf16.gmra.mxu0 %v195
    %v211 = vpop.f32.mrf.mxu0
    %v212 = vadd.f32 %v173, %v211
    %v213 = vpop.f32.mrf.mxu0
    %v214 = vadd.f32 %v178, %v213
    %215 = vdwg.mxu0
    %v216 = vtanh.pop %v207
    %v217 = vtanh.pop %v209
    %v218 = vtanh.pop %v212
    %v219 = vtanh.pop %v214
    %221 = vset.pattern.permute.xlu0 0
    %222 = vperm.xlu0 %221, %v45
    %v223 = vpop.permute.xlu0 %222
    %226 = vset.pattern.permute.xlu0 0
    %227 = vperm.xlu0 %226, %v46
    %v228 = vpop.permute.xlu0 %227
    %231 = vset.pattern.permute.xlu0 0
    %232 = vperm.xlu0 %231, %v47
    %v233 = vpop.permute.xlu0 %232
    %236 = vset.pattern.permute.xlu0 0
    %237 = vperm.xlu0 %236, %v48
    %v238 = vpop.permute.xlu0 %237
    %v240 = vmul.f32 %v216, %v223
    %v241 = vmul.f32 %v217, %v228
    %v242 = vmul.f32 %v218, %v233
    %v243 = vmul.f32 %v219, %v238
    %v244 = vadd.f32 %v240, %v241
    %v245 = vadd.f32 %v244, %v242
    %v246 = vadd.f32 %v245, %v243
    %v247 = vrot.slane %v246, 4
    %v248 = vadd.f32 %v246, %v247
    %v249 = vrot.slane %v248, 2
    %v250 = vadd.f32 %v248, %v249
    %v251 = vrot.slane %v250, 1
    %v252 = vadd.f32 %v250, %v251
    %v253 = vstv %s49
    %v254 = vadd.f32 %v252, %v253
    %255 = vst [vmem:[#allocation3] sm:$0x1] %v254
    // Predicated region
    $region30: #{tpu_custom_call.1} parent=1 // pred_check
      _
    $region31: #{tpu_custom_call.1} parent=1 // pred_check_branch
      %257 = sbr.rel (0) target = $region33
    $region32: #{tpu_custom_call.1} parent=1 // pred_region
      %259 = vsyncadd [#allocation4], 0
      %s261 = sshll.u32 [#allocation3], 4
      %s262 = int_to_ptr.vmem [resolvable:$true] %s261
      %s263 = sshll.u32 %s7, 4
      %s264 = int_to_ptr.hbm [resolvable:$true] %s263
      %266 = dma.vmem_to_hbm [thread:$0]  %s262, 16, %s264, [#allocation4]
    $region33: #{tpu_custom_call.1} parent=1 // pred_fallthru
      _
    // Predicated region
    $region34: #{tpu_custom_call.1} parent=1 // pred_check
      _
    $region35: #{tpu_custom_call.1} parent=1 // pred_check_branch
      %268 = sbr.rel (0) target = $region37
    $region36: #{tpu_custom_call.1} parent=1 // pred_region
      %270 = dma.done [#allocation4], 16
    $region37: #{tpu_custom_call.1} parent=1 // pred_fallthru
      _
    %271 = vsyncpa [#allocation4], 1

</llo_original>
